<compile_context>
chip_gen: v6e
topology: v6e:2x2x1
jax: 0.10.0
libtpu: 0.0.40
codegen_flags: <defaults>
</compile_context>

<pallas_src>
import jax
import jax.numpy as jnp
from jax.experimental import pallas as pl
from jax.experimental.pallas import tpu as pltpu


def _pick_hw_tile(hw, c, itemsize=4, max_block_bytes=4 << 20):
    """Largest H*W tile that is a multiple of 128, divides H*W, fits budget."""
    if hw % 128 != 0:
        return hw  # full-extent block is always legal
    tile = 128
    while hw % (tile * 2) == 0 and c * (tile * 2) * itemsize <= max_block_bytes:
        tile *= 2
    return tile


def make_channel_attention(C, H, W, reduction_ratio=16):
    Cr = max(C // reduction_ratio, 1)
    HW = H * W
    hw_tile = _pick_hw_tile(HW, C)
    assert HW % hw_tile == 0
    num_hw_tiles = HW // hw_tile
    inv_hw = 1.0 / float(HW)

    def kernel(x_ref, w1t_ref, w2_ref, o_ref, sum_acc, max_acc):
        t = pl.program_id(1)

        @pl.when(t == 0)
        def _init():
            sum_acc[...] = jnp.zeros_like(sum_acc)
            max_acc[...] = jnp.full_like(max_acc, -jnp.inf)

        # Single load of the tile; both reductions are fed from VMEM
        # (VMEM ld bandwidth >> HBM, so this is never the bottleneck).
        x = x_ref[0].astype(jnp.float32)                        # (C, hw_tile)
        sum_acc[...] += jnp.sum(x, axis=-1, keepdims=True)      # (C, 1)
        max_acc[...] = jnp.maximum(max_acc[...],
                                   jnp.max(x, axis=-1, keepdims=True))

        @pl.when(t == pl.num_programs(1) - 1)
        def _finalize():
            w1t = w1t_ref[...].astype(jnp.float32)              # (C, Cr) = w1.T
            w2 = w2_ref[...].astype(jnp.float32)                # (C, Cr)
            avg = sum_acc[...] * inv_hw                         # (C, 1)
            mx = max_acc[...]                                   # (C, 1)
            # hidden = relu(w1 @ pooled): broadcast-mul + sublane reduce
            h_avg = jnp.maximum(
                jnp.sum(w1t * avg, axis=0, keepdims=True), 0.0)     # (1, Cr)
            h_max = jnp.maximum(
                jnp.sum(w1t * mx, axis=0, keepdims=True), 0.0)      # (1, Cr)
            # out = w2 @ (h_avg + h_max): broadcast-mul + lane reduce
            o = jnp.sum(w2 * (h_avg + h_max), axis=1, keepdims=True)  # (C, 1)
            o_ref[0] = jax.nn.sigmoid(o).astype(o_ref.dtype)

    def channel_attention(x, w1, w2):
        """x: (B,C,H,W); w1: (Cr,C,1,1); w2: (C,Cr,1,1) -> (B,C,1,1)."""
        B, Cx, Hx, Wx = x.shape
        assert (Cx, Hx, Wx) == (C, H, W)
        x3 = x.reshape(B, C, HW)            # lane-dense view, free in XLA
        w1t = w1.reshape(Cr, C).T           # (C, Cr)
        w2m = w2.reshape(C, Cr)             # (C, Cr)

        out = pl.pallas_call(
            kernel,
            out_shape=jax.ShapeDtypeStruct((B, C, 1), x.dtype),
            grid_spec=pltpu.PrefetchScalarGridSpec(
                num_scalar_prefetch=0,
                grid=(B, num_hw_tiles),
                in_specs=[
                    pl.BlockSpec((1, C, hw_tile), lambda b, t: (b, 0, t)),
                    pl.BlockSpec((C, Cr), lambda b, t: (0, 0)),
                    pl.BlockSpec((C, Cr), lambda b, t: (0, 0)),
                ],
                out_specs=pl.BlockSpec((1, C, 1), lambda b, t: (b, 0, 0)),
                scratch_shapes=[
                    pltpu.VMEM((C, 1), jnp.float32),   # running sum
                    pltpu.VMEM((C, 1), jnp.float32),   # running max
                ],
            ),
            compiler_params=pltpu.CompilerParams(
                dimension_semantics=("parallel", "arbitrary"),
                vmem_limit_bytes=32 * 1024 * 1024,
            ),
        )(x3, w1t, w2m)
        return out.reshape(B, C, 1, 1)

    return channel_attention


def reference(x, w1, w2):
    B, C, H, W = x.shape
    Cr = w1.shape[0]
    avg = jnp.mean(x, axis=(2, 3))   # (B, C)
    mx = jnp.max(x, axis=(2, 3))     # (B, C)
    w1m = w1.reshape(Cr, C)
    w2m = w2.reshape(C, Cr)

    def fc(p):
        return jnp.maximum(p @ w1m.T, 0.0) @ w2m.T

    return jax.nn.sigmoid(fc(avg) + fc(mx)).reshape(B, C, 1, 1)


if __name__ == "__main__":
    # Module defaults: in_channels=64, reduction_ratio=16 -> hidden 4.
    B, C, H, W, R = 2, 64, 16, 16, 16
    Cr = C // R

    key = jax.random.PRNGKey(0)
    kx, k1, k2 = jax.random.split(key, 3)
    x = jax.random.normal(kx, (B, C, H, W), dtype=jnp.float32)
    # Conv2d(C, C//r, 1, bias=False) and Conv2d(C//r, C, 1, bias=False) weights
    b1 = 1.0 / jnp.sqrt(jnp.float32(C))
    b2 = 1.0 / jnp.sqrt(jnp.float32(Cr))
    w1 = jax.random.uniform(k1, (Cr, C, 1, 1), minval=-b1, maxval=b1,
                            dtype=jnp.float32)
    w2 = jax.random.uniform(k2, (C, Cr, 1, 1), minval=-b2, maxval=b2,
                            dtype=jnp.float32)

    fn = make_channel_attention(C, H, W, reduction_ratio=R)
    out = fn(x, w1, w2)
    jax.block_until_ready(out)

    ref = reference(x, w1, w2)
    assert out.shape == (B, C, 1, 1)
    assert jnp.allclose(out, ref, atol=1e-5, rtol=1e-5), "mismatch vs reference"

    print("KERNEL_OK")
</pallas_src>

<mosaic_0001>
module attributes {stable_mosaic.version = 11 : i64} {
  func.func @kernel(%arg0: i32, %arg1: i32, %arg2: memref<1x64x256xf32, #tpu.memory_space<vmem>>, %arg3: memref<64x4xf32, #tpu.memory_space<vmem>>, %arg4: memref<64x4xf32, #tpu.memory_space<vmem>>, %arg5: memref<1x64x1xf32, #tpu.memory_space<vmem>>, %arg6: memref<64x1xf32, #tpu.memory_space<vmem>>, %arg7: memref<64x1xf32, #tpu.memory_space<vmem>>) attributes {dimension_semantics = [#tpu.dimension_semantics<parallel>, #tpu.dimension_semantics<arbitrary>], iteration_bounds = array<i64: 2, 1>, scalar_prefetch = 0 : i64, scratch_operands = 2 : i64, tpu.core_type = #tpu.core_type<tc>, window_params = [{transform_indices = @transform_0, window_bounds = array<i64: 1, 64, 256>}, {pipeline_mode = #tpu.pipeline_mode<synchronous>, transform_indices = @transform_1, window_bounds = array<i64: 64, 4>}, {pipeline_mode = #tpu.pipeline_mode<synchronous>, transform_indices = @transform_2, window_bounds = array<i64: 64, 4>}, {transform_indices = @transform_3, window_bounds = array<i64: 1, 64, 1>}]} {
    %c0_i32 = arith.constant 0 : i32
    %0 = arith.cmpi eq, %arg1, %c0_i32 : i32
    %1 = arith.extui %0 : i1 to i32
    %c0_i32_0 = arith.constant 0 : i32
    %2 = arith.cmpi ne, %1, %c0_i32_0 : i32
    scf.if %2 {
      %cst_14 = arith.constant 0.000000e+00 : f32
      %18 = vector.broadcast %cst_14 : f32 to vector<64x1xf32>
      %c0_15 = arith.constant 0 : index
      %c0_16 = arith.constant 0 : index
      %19 = vector.load %arg6[%c0_15, %c0_16] : memref<64x1xf32, #tpu.memory_space<vmem>>, vector<64x1xf32>
      tpu.vector_store %arg6[%c0_15, %c0_16], %18 {strides = array<i32>} : memref<64x1xf32, #tpu.memory_space<vmem>>, vector<64x1xf32>,
      %cst_17 = arith.constant 0xFF800000 : f32
      %20 = vector.broadcast %cst_17 : f32 to vector<64x1xf32>
      %c0_18 = arith.constant 0 : index
      %c0_19 = arith.constant 0 : index
      %21 = vector.load %arg7[%c0_18, %c0_19] : memref<64x1xf32, #tpu.memory_space<vmem>>, vector<64x1xf32>
      tpu.vector_store %arg7[%c0_18, %c0_19], %20 {strides = array<i32>} : memref<64x1xf32, #tpu.memory_space<vmem>>, vector<64x1xf32>,
    } else {
    }
    %c0 = arith.constant 0 : index
    %c0_1 = arith.constant 0 : index
    %c0_2 = arith.constant 0 : index
    %3 = vector.load %arg2[%c0, %c0_1, %c0_2] : memref<1x64x256xf32, #tpu.memory_space<vmem>>, vector<1x64x256xf32>
    %4 = vector.shape_cast %3 : vector<1x64x256xf32> to vector<64x256xf32>
    %c0_3 = arith.constant 0 : index
    %c0_4 = arith.constant 0 : index
    %5 = vector.load %arg6[%c0_3, %c0_4] : memref<64x1xf32, #tpu.memory_space<vmem>>, vector<64x1xf32>
    %cst = arith.constant dense<0.000000e+00> : vector<64xf32>
    %6 = vector.multi_reduction <add>, %4, %cst [1] : vector<64x256xf32> to vector<64xf32>
    %7 = vector.shape_cast %6 : vector<64xf32> to vector<64x1xf32>
    %8 = arith.addf %5, %7 : vector<64x1xf32>
    %c0_5 = arith.constant 0 : index
    %c0_6 = arith.constant 0 : index
    %9 = vector.load %arg6[%c0_5, %c0_6] : memref<64x1xf32, #tpu.memory_space<vmem>>, vector<64x1xf32>
    tpu.vector_store %arg6[%c0_5, %c0_6], %8 {strides = array<i32>} : memref<64x1xf32, #tpu.memory_space<vmem>>, vector<64x1xf32>,
    %c0_7 = arith.constant 0 : index
    %c0_8 = arith.constant 0 : index
    %10 = vector.load %arg7[%c0_7, %c0_8] : memref<64x1xf32, #tpu.memory_space<vmem>>, vector<64x1xf32>
    %cst_9 = arith.constant dense<0xFF800000> : vector<64xf32>
    %11 = vector.multi_reduction <maximumf>, %4, %cst_9 [1] : vector<64x256xf32> to vector<64xf32>
    %12 = vector.shape_cast %11 : vector<64xf32> to vector<64x1xf32>
    %13 = arith.maximumf %10, %12 : vector<64x1xf32>
    %c0_10 = arith.constant 0 : index
    %c0_11 = arith.constant 0 : index
    %14 = vector.load %arg7[%c0_10, %c0_11] : memref<64x1xf32, #tpu.memory_space<vmem>>, vector<64x1xf32>
    tpu.vector_store %arg7[%c0_10, %c0_11], %13 {strides = array<i32>} : memref<64x1xf32, #tpu.memory_space<vmem>>, vector<64x1xf32>,
    %c0_i32_12 = arith.constant 0 : i32
    %15 = arith.cmpi eq, %arg1, %c0_i32_12 : i32
    %16 = arith.extui %15 : i1 to i32
    %c0_i32_13 = arith.constant 0 : i32
    %17 = arith.cmpi ne, %16, %c0_i32_13 : i32
    scf.if %17 {
      %c0_14 = arith.constant 0 : index
      %c0_15 = arith.constant 0 : index
      %18 = vector.load %arg3[%c0_14, %c0_15] : memref<64x4xf32, #tpu.memory_space<vmem>>, vector<64x4xf32>
      %c0_16 = arith.constant 0 : index
      %c0_17 = arith.constant 0 : index
      %19 = vector.load %arg4[%c0_16, %c0_17] : memref<64x4xf32, #tpu.memory_space<vmem>>, vector<64x4xf32>
      %c0_18 = arith.constant 0 : index
      %c0_19 = arith.constant 0 : index
      %20 = vector.load %arg6[%c0_18, %c0_19] : memref<64x1xf32, #tpu.memory_space<vmem>>, vector<64x1xf32>
      %cst_20 = arith.constant 3.906250e-03 : f32
      %21 = vector.broadcast %cst_20 : f32 to vector<64x1xf32>
      %22 = arith.mulf %20, %21 : vector<64x1xf32>
      %c0_21 = arith.constant 0 : index
      %c0_22 = arith.constant 0 : index
      %23 = vector.load %arg7[%c0_21, %c0_22] : memref<64x1xf32, #tpu.memory_space<vmem>>, vector<64x1xf32>
      %24 = vector.broadcast %22 : vector<64x1xf32> to vector<64x4xf32>
      %25 = arith.mulf %18, %24 : vector<64x4xf32>
      %cst_23 = arith.constant dense<0.000000e+00> : vector<4xf32>
      %26 = vector.multi_reduction <add>, %25, %cst_23 [0] : vector<64x4xf32> to vector<4xf32>
      %27 = vector.shape_cast %26 : vector<4xf32> to vector<1x4xf32>
      %cst_24 = arith.constant 0.000000e+00 : f32
      %28 = vector.broadcast %cst_24 : f32 to vector<1x4xf32>
      %29 = arith.maximumf %27, %28 : vector<1x4xf32>
      %30 = vector.broadcast %23 : vector<64x1xf32> to vector<64x4xf32>
      %31 = arith.mulf %18, %30 : vector<64x4xf32>
      %cst_25 = arith.constant dense<0.000000e+00> : vector<4xf32>
      %32 = vector.multi_reduction <add>, %31, %cst_25 [0] : vector<64x4xf32> to vector<4xf32>
      %33 = vector.shape_cast %32 : vector<4xf32> to vector<1x4xf32>
      %cst_26 = arith.constant 0.000000e+00 : f32
      %34 = vector.broadcast %cst_26 : f32 to vector<1x4xf32>
      %35 = arith.maximumf %33, %34 : vector<1x4xf32>
      %36 = arith.addf %29, %35 : vector<1x4xf32>
      %37 = vector.broadcast %36 : vector<1x4xf32> to vector<64x4xf32>
      %38 = arith.mulf %19, %37 : vector<64x4xf32>
      %cst_27 = arith.constant dense<0.000000e+00> : vector<64xf32>
      %39 = vector.multi_reduction <add>, %38, %cst_27 [1] : vector<64x4xf32> to vector<64xf32>
      %40 = vector.shape_cast %39 : vector<64xf32> to vector<64x1xf32>
      %41 = arith.negf %40 : vector<64x1xf32>
      %42 = math.exp %41 : vector<64x1xf32>
      %cst_28 = arith.constant 1.000000e+00 : f32
      %43 = vector.broadcast %cst_28 : f32 to vector<64x1xf32>
      %44 = arith.addf %43, %42 : vector<64x1xf32>
      %45 = arith.divf %43, %44 : vector<64x1xf32>
      %c0_29 = arith.constant 0 : index
      %c0_30 = arith.constant 0 : index
      %c0_31 = arith.constant 0 : index
      %46 = vector.load %arg5[%c0_29, %c0_30, %c0_31] : memref<1x64x1xf32, #tpu.memory_space<vmem>>, vector<1x64x1xf32>
      %47 = vector.shape_cast %46 : vector<1x64x1xf32> to vector<64x1xf32>
      %48 = vector.shape_cast %45 : vector<64x1xf32> to vector<1x64x1xf32>
      tpu.vector_store %arg5[%c0_29, %c0_30, %c0_31], %48 {strides = array<i32>} : memref<1x64x1xf32, #tpu.memory_space<vmem>>, vector<1x64x1xf32>,
    } else {
    }
    return
  }
  func.func @transform_0(%arg0: i32, %arg1: i32) -> (i32, i32, i32) {
    %c0_i32 = arith.constant 0 : i32
    %c0_i32_0 = arith.constant 0 : i32
    return %arg0, %c0_i32, %arg1 : i32, i32, i32
  }
  func.func @transform_1(%arg0: i32, %arg1: i32) -> (i32, i32) {
    %c0_i32 = arith.constant 0 : i32
    %c0_i32_0 = arith.constant 0 : i32
    %c0_i32_1 = arith.constant 0 : i32
    return %c0_i32, %c0_i32_0 : i32, i32
  }
  func.func @transform_2(%arg0: i32, %arg1: i32) -> (i32, i32) {
    %c0_i32 = arith.constant 0 : i32
    %c0_i32_0 = arith.constant 0 : i32
    %c0_i32_1 = arith.constant 0 : i32
    return %c0_i32, %c0_i32_0 : i32, i32
  }
  func.func @transform_3(%arg0: i32, %arg1: i32) -> (i32, i32, i32) {
    %c0_i32 = arith.constant 0 : i32
    %c0_i32_0 = arith.constant 0 : i32
    %c0_i32_1 = arith.constant 0 : i32
    return %arg0, %c0_i32, %c0_i32_0 : i32, i32, i32
  }
}

</mosaic_0001>

<llo_original>
// kernel: tpu_custom_call.1
$region0: #{tpu_custom_call.1}
  #allocation0 [shape = 'u32[]', space=smem, size = 0x4, offset = 0x4, fixed_abs, tag = 'smem constant byte address 0x4 - core index']
  #allocation1 [shape = 'u32[144,128]{1,0:T(1,128)}', space=vmem, size = 0x12000, scoped, tag = 'internal scratch']
  #allocation2 [shape = 'f32[64,1]{1,0:T(8,128)}', space=vmem, size = 0x8000, scoped, tag = 'scratch operand']
  #allocation3 [shape = 'f32[64,1]{1,0:T(8,128)}', space=vmem, size = 0x8000, scoped, tag = 'scratch operand']
  %s0 = inlined_call_operand.hbm [shape: f32[2,64,256], index: 0, kind: input, shape index: {}]
  %s1 = inlined_call_operand.vmem [shape: f32[64,4], index: 1, kind: input, shape index: {}]
  %s2 = inlined_call_operand.vmem [shape: f32[64,4], index: 2, kind: input, shape index: {}]
  %s3 = inlined_call_operand.vmem [shape: f32[2,64,1], index: 3, kind: output, shape index: {}]
  %s4 = sld [smem:[#allocation0]]
  $region57: #{tpu_custom_call.1} parent=0
    _
  %s6 = ssub.s32 1, %s4
  %s7 = scalar_select 0, %s6, %s4
  $region1: #{tpu_custom_call.1} parent=0
    #allocation4 [shape = 'u8[131072]{0}', space=vmem, size = 0x20000, scoped, tag = 'input window, operand 0']
    #allocation5 [shape = 's32[2]{0}', space=sflag, size = 0x8, scoped, tag = 'scoped memory for tpu_custom_call.1']
    %8 = vsyncpa [#allocation5], 0
    %s9 = scalar_lea.sflag [#allocation5], 1
    %10 = vsyncpa %s9, 0
    loop: start=0, step=1, limit=4
    $region2: #{tpu_custom_call.1} parent=1 // loop_pre_header
      _
    $region3: #{tpu_custom_call.1} parent=1 // loop_header
      %s12 = sphi 0, %s16
      %p13 = scmp.ge.s32.totalorder %s12, 4
      %s19 = sphi 0, %s31
      %s20 = sphi 0, %s27
      %s21 = sphi 0, %s19
      %s22 = sphi 0, %s20
      %s23 = sphi 0, %s21
      %s24 = sphi 0, %s22
      %s36 = sphi 0, %s38
      %s39 = sphi 0, %s36
      %s40 = sphi 0, %s39
      %s56 = sphi 0, %s40
      %s60 = sphi 0, %s60
      %s62 = sphi 0, %s60
      %s63 = sphi 0, %s62
      %s77 = sphi 0, %s63
      %s81 = sphi 0, %s81
      %s83 = sphi 0, %s81
      %s84 = sphi 0, %s83
      %s98 = sphi 0, %s84
      %s104 = sphi 0, %s106
      %s107 = sphi 0, %s104
      %s108 = sphi 0, %s107
      %s124 = sphi 0, %s108
    $region4: #{tpu_custom_call.1} parent=1 // loop_header_branch
      %15 = sbr.rel (%p13) target = $region8
    $region5: #{tpu_custom_call.1} parent=1 // loop_body
      %s17 = ssub.s32 %s12, 1
      %s18 = ssub.s32 %s12, 2
      %s25 = sadd.s32 1, %s20
      %p26 = scmp.ge.s32.totalorder %s25, 1
      %s27 = scalar_select %p26, 0, %s25
      %s28 = sadd.s32 1, %s19
      %s29 = scalar_select %p26, %s28, %s19
      %p30 = scmp.ge.s32.totalorder %s29, 2
      %s31 = scalar_select %p30, 0, %s29
      %s32 = ssub.s32 %s19, %s31
      %s33 = ssub.s32 %s20, %s27
      %s34 = sor.u32 %s32, %s33
      %p35 = scmp.eq.s32.totalorder %s34, 0
      %s37 = sadd.s32 %s36, 1
      %s38 = scalar_select %p35, %s36, %s37
      %p41 = pneg %p35
      %p42 = scmp.eq.s32.totalorder %s12, 1
      %p43 = por %p41, %p42
      %p44 = scmp.ne.s32.totalorder %s36, %s39
      %p45 = scmp.eq.s32.totalorder %s12, 0
      %p46 = por %p44, %p45
      %p47 = scmp.ne.s32.totalorder %s36, %s39
      %p48 = scmp.eq.s32.totalorder %s17, 1
      %p49 = por %p47, %p48
      %p50 = scmp.ne.s32.totalorder %s39, %s40
      %p51 = scmp.eq.s32.totalorder %s17, 0
      %p52 = por %p50, %p51
      %p53 = scmp.ne.s32.totalorder %s39, %s40
      %p54 = scmp.eq.s32.totalorder %s18, 1
      %p55 = por %p53, %p54
      %p57 = scmp.ne.s32.totalorder %s40, %s56
      %p58 = scmp.eq.s32.totalorder %s18, 0
      %p59 = por %p57, %p58
      %s61 = sadd.s32 %s60, 1
      %p64 = scmp.eq.s32.totalorder %s12, 1
      %p65 = scmp.ne.s32.totalorder %s60, %s62
      %p66 = scmp.eq.s32.totalorder %s12, 0
      %p67 = por %p65, %p66
      %p68 = scmp.ne.s32.totalorder %s60, %s62
      %p69 = scmp.eq.s32.totalorder %s17, 1
      %p70 = por %p68, %p69
      %p71 = scmp.ne.s32.totalorder %s62, %s63
      %p72 = scmp.eq.s32.totalorder %s17, 0
      %p73 = por %p71, %p72
      %p74 = scmp.ne.s32.totalorder %s62, %s63
      %p75 = scmp.eq.s32.totalorder %s18, 1
      %p76 = por %p74, %p75
      %p78 = scmp.ne.s32.totalorder %s63, %s77
      %p79 = scmp.eq.s32.totalorder %s18, 0
      %p80 = por %p78, %p79
      %s82 = sadd.s32 %s81, 1
      %p85 = scmp.eq.s32.totalorder %s12, 1
      %p86 = scmp.ne.s32.totalorder %s81, %s83
      %p87 = scmp.eq.s32.totalorder %s12, 0
      %p88 = por %p86, %p87
      %p89 = scmp.ne.s32.totalorder %s81, %s83
      %p90 = scmp.eq.s32.totalorder %s17, 1
      %p91 = por %p89, %p90
      %p92 = scmp.ne.s32.totalorder %s83, %s84
      %p93 = scmp.eq.s32.totalorder %s17, 0
      %p94 = por %p92, %p93
      %p95 = scmp.ne.s32.totalorder %s83, %s84
      %p96 = scmp.eq.s32.totalorder %s18, 1
      %p97 = por %p95, %p96
      %p99 = scmp.ne.s32.totalorder %s84, %s98
      %p100 = scmp.eq.s32.totalorder %s18, 0
      %p101 = por %p99, %p100
      %s102 = ssub.s32 %s19, %s31
      %p103 = scmp.eq.s32.totalorder %s102, 0
      %s105 = sadd.s32 %s104, 1
      %s106 = scalar_select %p103, %s104, %s105
      %p109 = pneg %p103
      %p110 = scmp.eq.s32.totalorder %s12, 1
      %p111 = por %p109, %p110
      %p112 = scmp.ne.s32.totalorder %s104, %s107
      %p113 = scmp.eq.s32.totalorder %s12, 0
      %p114 = por %p112, %p113
      %p115 = scmp.ne.s32.totalorder %s104, %s107
      %p116 = scmp.eq.s32.totalorder %s17, 1
      %p117 = por %p115, %p116
      %p118 = scmp.ne.s32.totalorder %s107, %s108
      %p119 = scmp.eq.s32.totalorder %s17, 0
      %p120 = por %p118, %p119
      %p121 = scmp.ne.s32.totalorder %s107, %s108
      %p122 = scmp.eq.s32.totalorder %s18, 1
      %p123 = por %p121, %p122
      %p125 = scmp.ne.s32.totalorder %s108, %s124
      %p126 = scmp.eq.s32.totalorder %s18, 0
      %p127 = por %p125, %p126
      %p128 = scmp.le.s32.totalorder 1, %s12
      %p129 = scmp.lt.s32.totalorder %s12, 3
      %p130 = pnand %p128, %p129
      %p131 = pneg %p130
      // Predicated region
      $region9: #{tpu_custom_call.1} parent=5 // pred_check
        _
      $region10: #{tpu_custom_call.1} parent=5 // pred_check_branch
        %133 = sbr.rel (%p130) target = $region12
      $region11: #{tpu_custom_call.1} parent=5 // pred_region
        %s134 = ssub.s32 %s12, 1
        // Predicated region
        $region13: #{tpu_custom_call.1} parent=11 // pred_check
          %p135 = pneg %p73
        $region14: #{tpu_custom_call.1} parent=11 // pred_check_branch
          %137 = sbr.rel (%p135) target = $region16
        $region15: #{tpu_custom_call.1} parent=11 // pred_region
          _
        $region16: #{tpu_custom_call.1} parent=11 // pred_fallthru
          _
        // Predicated region
        $region17: #{tpu_custom_call.1} parent=11 // pred_check
          %p138 = pneg %p94
        $region18: #{tpu_custom_call.1} parent=11 // pred_check_branch
          %140 = sbr.rel (%p138) target = $region20
        $region19: #{tpu_custom_call.1} parent=11 // pred_region
          _
        $region20: #{tpu_custom_call.1} parent=11 // pred_fallthru
          _
      $region12: #{tpu_custom_call.1} parent=5 // pred_fallthru
        _
      %p141 = scmp.lt.s32.totalorder %s12, 2
      // Predicated region
      $region21: #{tpu_custom_call.1} parent=5 // pred_check
        %p142 = pneg %p141
      $region22: #{tpu_custom_call.1} parent=5 // pred_check_branch
        %144 = sbr.rel (%p142) target = $region24
      $region23: #{tpu_custom_call.1} parent=5 // pred_region
        // Predicated region
        $region25: #{tpu_custom_call.1} parent=23 // pred_check
          %p145 = pneg %p46
        $region26: #{tpu_custom_call.1} parent=23 // pred_check_branch
          %147 = sbr.rel (%p145) target = $region28
        $region27: #{tpu_custom_call.1} parent=23 // pred_region
          %s148 = sand.u32 %s36, 1
          %s149 = scalar_lea.sflag [#allocation5], %s148
          %s150 = sand.u32 %s36, 1
          %s151 = smul.addr %s150, 128
          %s152 = scalar_lea.vmem [#allocation4], %s151
          %s153 = smul.u32 2, %s20
          %s155 = ssub.s32 2048, 2048
          %156 = vsyncadd %s149, %s155
          %s157 = smul.addr %s19, 16
          %s158 = sadd.s32 %s153, %s157
          %s159 = smul.addr %s158, 128
          %s160 = scalar_lea.hbm %s0, %s159
          %s161 = sshll.u32 %s152, 4
          %s162 = int_to_ptr.vmem [resolvable:$true] %s161
          %167 = dma.hbm_to_vmem [thread:$0]  %s160, 2048, %s162, %s149, 256, 256, 16
        $region28: #{tpu_custom_call.1} parent=23 // pred_fallthru
          _
      $region24: #{tpu_custom_call.1} parent=5 // pred_fallthru
        _
      %p168 = scmp.le.s32.totalorder 1, %s12
      %p169 = scmp.lt.s32.totalorder %s12, 3
      %p170 = pnand %p168, %p169
      %p171 = pneg %p170
      // Predicated region
      $region29: #{tpu_custom_call.1} parent=5 // pred_check
        _
      $region30: #{tpu_custom_call.1} parent=5 // pred_check_branch
        %173 = sbr.rel (%p170) target = $region32
      $region31: #{tpu_custom_call.1} parent=5 // pred_region
        %s174 = ssub.s32 %s12, 1
        %s175 = sand.u32 %s39, 1
        %s176 = scalar_lea.sflag [#allocation5], %s175
        %s177 = sand.u32 %s39, 1
        %s178 = smul.addr %s177, 128
        %s179 = scalar_lea.vmem [#allocation4], %s178
        // Predicated region
        $region33: #{tpu_custom_call.1} parent=31 // pred_check
          %p180 = pneg %p52
        $region34: #{tpu_custom_call.1} parent=31 // pred_check_branch
          %182 = sbr.rel (%p180) target = $region36
        $region35: #{tpu_custom_call.1} parent=31 // pred_region
          %183 = dma.done %s176, 2048
        $region36: #{tpu_custom_call.1} parent=31 // pred_fallthru
          _
        %s184 = sand.u32 %s39, 1
        %s185 = scalar_lea.sflag [#allocation5], %s184
        %s186 = sand.u32 %s39, 1
        %s187 = smul.addr %s186, 128
        %s188 = scalar_lea.vmem [#allocation4], %s187
        %p189 = pneg %p52
        %p190 = pneg %p49
        %p191 = pneg %p73
        %p192 = pneg %p70
        %p193 = pneg %p94
        %p194 = pneg %p91
        %p195 = pneg %p120
        %p196 = pneg %p117
        %p197 = scmp.lt.s32.totalorder %s21, 1
        %s198 = scalar_select %p197, %s21, 1
        %s199 = smul.addr %s198, 8
        %s200 = smul.addr %s199, 8
        %s201 = scalar_lea.vmem %s3, %s200
        %s202 = smul.u32 2, %s22
        %p203 = scmp.lt.s32.totalorder %s21, 1
        %s204 = scalar_select %p203, %s21, 1
        %s205 = smul.addr %s204, 8
        %s206 = smul.addr %s205, 8
        %s207 = scalar_lea.vmem %s3, %s206
        %p208 = scmp.eq.s32.totalorder %s22, 0
        // Predicated region
        $region37: #{tpu_custom_call.1} parent=31 // pred_check
          %p209 = pneg %p208
        $region38: #{tpu_custom_call.1} parent=31 // pred_check_branch
          %211 = sbr.rel (%p209) target = $region40
        $region39: #{tpu_custom_call.1} parent=31 // pred_region
          %vm212 = vcmask 7168
          %213 = vst.msk [vmem:[#allocation2] sm:$0xff] %vm212, 0.0
          %214 = vst.msk [vmem:[#allocation2 + $0x8] sm:$0xff] %vm212, 0.0
          %215 = vst.msk [vmem:[#allocation2 + $0x10] sm:$0xff] %vm212, 0.0
          %216 = vst.msk [vmem:[#allocation2 + $0x18] sm:$0xff] %vm212, 0.0
          %217 = vst.msk [vmem:[#allocation2 + $0x20] sm:$0xff] %vm212, 0.0
          %218 = vst.msk [vmem:[#allocation2 + $0x28] sm:$0xff] %vm212, 0.0
          %219 = vst.msk [vmem:[#allocation2 + $0x30] sm:$0xff] %vm212, 0.0
          %220 = vst.msk [vmem:[#allocation2 + $0x38] sm:$0xff] %vm212, 0.0
          %221 = vst.msk [vmem:[#allocation3] sm:$0xff] %vm212, -inf
          %222 = vst.msk [vmem:[#allocation3 + $0x8] sm:$0xff] %vm212, -inf
          %223 = vst.msk [vmem:[#allocation3 + $0x10] sm:$0xff] %vm212, -inf
          %224 = vst.msk [vmem:[#allocation3 + $0x18] sm:$0xff] %vm212, -inf
          %225 = vst.msk [vmem:[#allocation3 + $0x20] sm:$0xff] %vm212, -inf
          %226 = vst.msk [vmem:[#allocation3 + $0x28] sm:$0xff] %vm212, -inf
          %227 = vst.msk [vmem:[#allocation3 + $0x30] sm:$0xff] %vm212, -inf
          %228 = vst.msk [vmem:[#allocation3 + $0x38] sm:$0xff] %vm212, -inf
        $region40: #{tpu_custom_call.1} parent=31 // pred_fallthru
          _
        %v229 = vld [vmem:[%s179] sm:$0xff]
        %v230 = vld [vmem:[%s179 + $0x8] sm:$0xff]
        %v231 = vld [vmem:[%s179 + $0x10] sm:$0xff]
        %v232 = vld [vmem:[%s179 + $0x18] sm:$0xff]
        %v233 = vld [vmem:[%s179 + $0x20] sm:$0xff]
        %v234 = vld [vmem:[%s179 + $0x28] sm:$0xff]
        %v235 = vld [vmem:[%s179 + $0x30] sm:$0xff]
        %v236 = vld [vmem:[%s179 + $0x38] sm:$0xff]
        %v237 = vld [vmem:[%s179 + $0x40] sm:$0xff]
        %v238 = vld [vmem:[%s179 + $0x48] sm:$0xff]
        %v239 = vld [vmem:[%s179 + $0x50] sm:$0xff]
        %v240 = vld [vmem:[%s179 + $0x58] sm:$0xff]
        %v241 = vld [vmem:[%s179 + $0x60] sm:$0xff]
        %v242 = vld [vmem:[%s179 + $0x68] sm:$0xff]
        %v243 = vld [vmem:[%s179 + $0x70] sm:$0xff]
        %v244 = vld [vmem:[%s179 + $0x78] sm:$0xff]
        %v245 = vld [vmem:[#allocation2] sm:$0xff]
        %v246 = vld [vmem:[#allocation2 + $0x8] sm:$0xff]
        %v247 = vld [vmem:[#allocation2 + $0x10] sm:$0xff]
        %v248 = vld [vmem:[#allocation2 + $0x18] sm:$0xff]
        %v249 = vld [vmem:[#allocation2 + $0x20] sm:$0xff]
        %v250 = vld [vmem:[#allocation2 + $0x28] sm:$0xff]
        %v251 = vld [vmem:[#allocation2 + $0x30] sm:$0xff]
        %v252 = vld [vmem:[#allocation2 + $0x38] sm:$0xff]
        %v253 = vadd.f32 %v229, %v230
        %254 = vadd.xlane.f32.xlu0 %v253
        %v255 = vpop.xlane.xlu0 %254
        %v256 = vadd.f32 %v231, %v232
        %257 = vadd.xlane.f32.xlu0 %v256
        %v258 = vpop.xlane.xlu0 %257
        %v259 = vadd.f32 %v233, %v234
        %260 = vadd.xlane.f32.xlu0 %v259
        %v261 = vpop.xlane.xlu0 %260
        %v262 = vadd.f32 %v235, %v236
        %263 = vadd.xlane.f32.xlu0 %v262
        %v264 = vpop.xlane.xlu0 %263
        %v265 = vadd.f32 %v237, %v238
        %266 = vadd.xlane.f32.xlu0 %v265
        %v267 = vpop.xlane.xlu0 %266
        %v268 = vadd.f32 %v239, %v240
        %269 = vadd.xlane.f32.xlu0 %v268
        %v270 = vpop.xlane.xlu0 %269
        %v271 = vadd.f32 %v241, %v242
        %272 = vadd.xlane.f32.xlu0 %v271
        %v273 = vpop.xlane.xlu0 %272
        %v274 = vadd.f32 %v243, %v244
        %275 = vadd.xlane.f32.xlu0 %v274
        %v276 = vpop.xlane.xlu0 %275
        %v277 = vadd.f32 %v245, %v255
        %v278 = vadd.f32 %v246, %v258
        %v279 = vadd.f32 %v247, %v261
        %v280 = vadd.f32 %v248, %v264
        %v281 = vadd.f32 %v249, %v267
        %v282 = vadd.f32 %v250, %v270
        %v283 = vadd.f32 %v251, %v273
        %v284 = vadd.f32 %v252, %v276
        %vm285 = vcmask 7168
        %286 = vst.msk [vmem:[#allocation2] sm:$0xff] %vm285, %v277
        %287 = vst.msk [vmem:[#allocation2 + $0x8] sm:$0xff] %vm285, %v278
        %288 = vst.msk [vmem:[#allocation2 + $0x10] sm:$0xff] %vm285, %v279
        %289 = vst.msk [vmem:[#allocation2 + $0x18] sm:$0xff] %vm285, %v280
        %290 = vst.msk [vmem:[#allocation2 + $0x20] sm:$0xff] %vm285, %v281
        %291 = vst.msk [vmem:[#allocation2 + $0x28] sm:$0xff] %vm285, %v282
        %292 = vst.msk [vmem:[#allocation2 + $0x30] sm:$0xff] %vm285, %v283
        %293 = vst.msk [vmem:[#allocation2 + $0x38] sm:$0xff] %vm285, %v284
        %v294 = vld [vmem:[#allocation3] sm:$0xff]
        %v295 = vld [vmem:[#allocation3 + $0x8] sm:$0xff]
        %v296 = vld [vmem:[#allocation3 + $0x10] sm:$0xff]
        %v297 = vld [vmem:[#allocation3 + $0x18] sm:$0xff]
        %v298 = vld [vmem:[#allocation3 + $0x20] sm:$0xff]
        %v299 = vld [vmem:[#allocation3 + $0x28] sm:$0xff]
        %v300 = vld [vmem:[#allocation3 + $0x30] sm:$0xff]
        %v301 = vld [vmem:[#allocation3 + $0x38] sm:$0xff]
        %v302 = vmax.f32 %v229, %v230
        %303 = vmax.xlane.f32.xlu0 %v302
        %v304 = vpop.xlane.xlu0 %303
        %v305 = vmax.f32 %v231, %v232
        %306 = vmax.xlane.f32.xlu0 %v305
        %v307 = vpop.xlane.xlu0 %306
        %v308 = vmax.f32 %v233, %v234
        %309 = vmax.xlane.f32.xlu0 %v308
        %v310 = vpop.xlane.xlu0 %309
        %v311 = vmax.f32 %v235, %v236
        %312 = vmax.xlane.f32.xlu0 %v311
        %v313 = vpop.xlane.xlu0 %312
        %v314 = vmax.f32 %v237, %v238
        %315 = vmax.xlane.f32.xlu0 %v314
        %v316 = vpop.xlane.xlu0 %315
        %v317 = vmax.f32 %v239, %v240
        %318 = vmax.xlane.f32.xlu0 %v317
        %v319 = vpop.xlane.xlu0 %318
        %v320 = vmax.f32 %v241, %v242
        %321 = vmax.xlane.f32.xlu0 %v320
        %v322 = vpop.xlane.xlu0 %321
        %v323 = vmax.f32 %v243, %v244
        %324 = vmax.xlane.f32.xlu0 %v323
        %v325 = vpop.xlane.xlu0 %324
        %v326 = vmax.f32 %v294, %v304
        %v327 = vmax.f32 %v295, %v307
        %v328 = vmax.f32 %v296, %v310
        %v329 = vmax.f32 %v297, %v313
        %v330 = vmax.f32 %v298, %v316
        %v331 = vmax.f32 %v299, %v319
        %v332 = vmax.f32 %v300, %v322
        %v333 = vmax.f32 %v301, %v325
        %334 = vst.msk [vmem:[#allocation3] sm:$0xff] %vm285, %v326
        %335 = vst.msk [vmem:[#allocation3 + $0x8] sm:$0xff] %vm285, %v327
        %336 = vst.msk [vmem:[#allocation3 + $0x10] sm:$0xff] %vm285, %v328
        %337 = vst.msk [vmem:[#allocation3 + $0x18] sm:$0xff] %vm285, %v329
        %338 = vst.msk [vmem:[#allocation3 + $0x20] sm:$0xff] %vm285, %v330
        %339 = vst.msk [vmem:[#allocation3 + $0x28] sm:$0xff] %vm285, %v331
        %340 = vst.msk [vmem:[#allocation3 + $0x30] sm:$0xff] %vm285, %v332
        %341 = vst.msk [vmem:[#allocation3 + $0x38] sm:$0xff] %vm285, %v333
        // Predicated region
        $region41: #{tpu_custom_call.1} parent=31 // pred_check
          %p342 = pneg %p208
        $region42: #{tpu_custom_call.1} parent=31 // pred_check_branch
          %344 = sbr.rel (%p342) target = $region44
        $region43: #{tpu_custom_call.1} parent=31 // pred_region
          %v345 = vld [vmem:[%s1] sm:$0xff]
          %v346 = vld [vmem:[%s1 + $0x8] sm:$0xff]
          %v347 = vld [vmem:[%s1 + $0x10] sm:$0xff]
          %v348 = vld [vmem:[%s1 + $0x18] sm:$0xff]
          %v349 = vld [vmem:[%s1 + $0x20] sm:$0xff]
          %v350 = vld [vmem:[%s1 + $0x28] sm:$0xff]
          %v351 = vld [vmem:[%s1 + $0x30] sm:$0xff]
          %v352 = vld [vmem:[%s1 + $0x38] sm:$0xff]
          %v353 = vld [vmem:[%s2] sm:$0xff]
          %v354 = vld [vmem:[%s2 + $0x8] sm:$0xff]
          %v355 = vld [vmem:[%s2 + $0x10] sm:$0xff]
          %v356 = vld [vmem:[%s2 + $0x18] sm:$0xff]
          %v357 = vld [vmem:[%s2 + $0x20] sm:$0xff]
          %v358 = vld [vmem:[%s2 + $0x28] sm:$0xff]
          %v359 = vld [vmem:[%s2 + $0x30] sm:$0xff]
          %v360 = vld [vmem:[%s2 + $0x38] sm:$0xff]
          %v361 = vld [vmem:[#allocation2] sm:$0xff]
          %v362 = vld [vmem:[#allocation2 + $0x8] sm:$0xff]
          %v363 = vld [vmem:[#allocation2 + $0x10] sm:$0xff]
          %v364 = vld [vmem:[#allocation2 + $0x18] sm:$0xff]
          %v365 = vld [vmem:[#allocation2 + $0x20] sm:$0xff]
          %v366 = vld [vmem:[#allocation2 + $0x28] sm:$0xff]
          %v367 = vld [vmem:[#allocation2 + $0x30] sm:$0xff]
          %v368 = vld [vmem:[#allocation2 + $0x38] sm:$0xff]
          %v369 = vmul.f32 %v361, 0.00390625
          %v370 = vmul.f32 %v362, 0.00390625
          %v371 = vmul.f32 %v363, 0.00390625
          %v372 = vmul.f32 %v364, 0.00390625
          %v373 = vmul.f32 %v365, 0.00390625
          %v374 = vmul.f32 %v366, 0.00390625
          %v375 = vmul.f32 %v367, 0.00390625
          %v376 = vmul.f32 %v368, 0.00390625
          %v377 = vld [vmem:[#allocation3] sm:$0xff]
          %v378 = vld [vmem:[#allocation3 + $0x8] sm:$0xff]
          %v379 = vld [vmem:[#allocation3 + $0x10] sm:$0xff]
          %v380 = vld [vmem:[#allocation3 + $0x18] sm:$0xff]
          %v381 = vld [vmem:[#allocation3 + $0x20] sm:$0xff]
          %v382 = vld [vmem:[#allocation3 + $0x28] sm:$0xff]
          %v383 = vld [vmem:[#allocation3 + $0x30] sm:$0xff]
          %v384 = vld [vmem:[#allocation3 + $0x38] sm:$0xff]
          %386 = vset.pattern.permute.xlu0 0
          %387 = vperm.xlu0 %386, %v369
          %v388 = vpop.permute.xlu0 %387
          %391 = vset.pattern.permute.xlu0 0
          %392 = vperm.xlu0 %391, %v370
          %v393 = vpop.permute.xlu0 %392
          %396 = vset.pattern.permute.xlu0 0
          %397 = vperm.xlu0 %396, %v371
          %v398 = vpop.permute.xlu0 %397
          %401 = vset.pattern.permute.xlu0 0
          %402 = vperm.xlu0 %401, %v372
          %v403 = vpop.permute.xlu0 %402
          %406 = vset.pattern.permute.xlu0 0
          %407 = vperm.xlu0 %406, %v373
          %v408 = vpop.permute.xlu0 %407
          %411 = vset.pattern.permute.xlu0 0
          %412 = vperm.xlu0 %411, %v374
          %v413 = vpop.permute.xlu0 %412
          %416 = vset.pattern.permute.xlu0 0
          %417 = vperm.xlu0 %416, %v375
          %v418 = vpop.permute.xlu0 %417
          %421 = vset.pattern.permute.xlu0 0
          %422 = vperm.xlu0 %421, %v376
          %v423 = vpop.permute.xlu0 %422
          %v425 = vmul.f32 %v345, %v388
          %v426 = vmul.f32 %v346, %v393
          %v427 = vmul.f32 %v347, %v398
          %v428 = vmul.f32 %v348, %v403
          %v429 = vmul.f32 %v349, %v408
          %v430 = vmul.f32 %v350, %v413
          %v431 = vmul.f32 %v351, %v418
          %v432 = vmul.f32 %v352, %v423
          %vm433 = vcmask 31744
          %v434 = vsel %vm433, %v425, 0.0
          %v435 = vsel %vm433, %v426, 0.0
          %v436 = vadd.f32 %v434, %v435
          %v437 = vsel %vm433, %v427, 0.0
          %v438 = vadd.f32 %v436, %v437
          %v439 = vsel %vm433, %v428, 0.0
          %v440 = vadd.f32 %v438, %v439
          %v441 = vsel %vm433, %v429, 0.0
          %v442 = vadd.f32 %v440, %v441
          %v443 = vsel %vm433, %v430, 0.0
          %v444 = vadd.f32 %v442, %v443
          %v445 = vsel %vm433, %v431, 0.0
          %v446 = vadd.f32 %v444, %v445
          %v447 = vsel %vm433, %v432, 0.0
          %v448 = vadd.f32 %v446, %v447
          %v449 = vrot.slane %v448, 4
          %v450 = vadd.f32 %v448, %v449
          %v451 = vrot.slane %v450, 2
          %v452 = vadd.f32 %v450, %v451
          %v453 = vrot.slane %v452, 1
          %v454 = vadd.f32 %v452, %v453
          %v455 = vmax.f32 %v454, 0.0
          %457 = vset.pattern.permute.xlu0 0
          %458 = vperm.xlu0 %457, %v377
          %v459 = vpop.permute.xlu0 %458
          %462 = vset.pattern.permute.xlu0 0
          %463 = vperm.xlu0 %462, %v378
          %v464 = vpop.permute.xlu0 %463
          %467 = vset.pattern.permute.xlu0 0
          %468 = vperm.xlu0 %467, %v379
          %v469 = vpop.permute.xlu0 %468
          %472 = vset.pattern.permute.xlu0 0
          %473 = vperm.xlu0 %472, %v380
          %v474 = vpop.permute.xlu0 %473
          %477 = vset.pattern.permute.xlu0 0
          %478 = vperm.xlu0 %477, %v381
          %v479 = vpop.permute.xlu0 %478
          %482 = vset.pattern.permute.xlu0 0
          %483 = vperm.xlu0 %482, %v382
          %v484 = vpop.permute.xlu0 %483
          %487 = vset.pattern.permute.xlu0 0
          %488 = vperm.xlu0 %487, %v383
          %v489 = vpop.permute.xlu0 %488
          %492 = vset.pattern.permute.xlu0 0
          %493 = vperm.xlu0 %492, %v384
          %v494 = vpop.permute.xlu0 %493
          %v496 = vmul.f32 %v345, %v459
          %v497 = vmul.f32 %v346, %v464
          %v498 = vmul.f32 %v347, %v469
          %v499 = vmul.f32 %v348, %v474
          %v500 = vmul.f32 %v349, %v479
          %v501 = vmul.f32 %v350, %v484
          %v502 = vmul.f32 %v351, %v489
          %v503 = vmul.f32 %v352, %v494
          %v504 = vsel %vm433, %v496, 0.0
          %v505 = vsel %vm433, %v497, 0.0
          %v506 = vadd.f32 %v504, %v505
          %v507 = vsel %vm433, %v498, 0.0
          %v508 = vadd.f32 %v506, %v507
          %v509 = vsel %vm433, %v499, 0.0
          %v510 = vadd.f32 %v508, %v509
          %v511 = vsel %vm433, %v500, 0.0
          %v512 = vadd.f32 %v510, %v511
          %v513 = vsel %vm433, %v501, 0.0
          %v514 = vadd.f32 %v512, %v513
          %v515 = vsel %vm433, %v502, 0.0
          %v516 = vadd.f32 %v514, %v515
          %v517 = vsel %vm433, %v503, 0.0
          %v518 = vadd.f32 %v516, %v517
          %v519 = vrot.slane %v518, 4
          %v520 = vadd.f32 %v518, %v519
          %v521 = vrot.slane %v520, 2
          %v522 = vadd.f32 %v520, %v521
          %v523 = vrot.slane %v522, 1
          %v524 = vadd.f32 %v522, %v523
          %v525 = vmax.f32 %v524, 0.0
          %v526 = vadd.f32 %v455, %v525
          %v527 = vmul.f32 %v353, %v526
          %v528 = vmul.f32 %v354, %v526
          %v529 = vmul.f32 %v355, %v526
          %v530 = vmul.f32 %v356, %v526
          %v531 = vmul.f32 %v357, %v526
          %v532 = vmul.f32 %v358, %v526
          %v533 = vmul.f32 %v359, %v526
          %v534 = vmul.f32 %v360, %v526
          %v535 = vsel %vm433, %v527, 0.0
          %536 = vadd.xlane.f32.xlu0 %v535
          %v537 = vpop.xlane.xlu0 %536
          %v538 = vsel %vm433, %v528, 0.0
          %539 = vadd.xlane.f32.xlu0 %v538
          %v540 = vpop.xlane.xlu0 %539
          %v541 = vsel %vm433, %v529, 0.0
          %542 = vadd.xlane.f32.xlu0 %v541
          %v543 = vpop.xlane.xlu0 %542
          %v544 = vsel %vm433, %v530, 0.0
          %545 = vadd.xlane.f32.xlu0 %v544
          %v546 = vpop.xlane.xlu0 %545
          %v547 = vsel %vm433, %v531, 0.0
          %548 = vadd.xlane.f32.xlu0 %v547
          %v549 = vpop.xlane.xlu0 %548
          %v550 = vsel %vm433, %v532, 0.0
          %551 = vadd.xlane.f32.xlu0 %v550
          %v552 = vpop.xlane.xlu0 %551
          %v553 = vsel %vm433, %v533, 0.0
          %554 = vadd.xlane.f32.xlu0 %v553
          %v555 = vpop.xlane.xlu0 %554
          %v556 = vsel %vm433, %v534, 0.0
          %557 = vadd.xlane.f32.xlu0 %v556
          %v558 = vpop.xlane.xlu0 %557
          %v559 = vxor.u32 %v537, 2147483648
          %v560 = vxor.u32 %v540, 2147483648
          %v561 = vxor.u32 %v543, 2147483648
          %v562 = vxor.u32 %v546, 2147483648
          %v563 = vxor.u32 %v549, 2147483648
          %v564 = vxor.u32 %v552, 2147483648
          %v565 = vxor.u32 %v555, 2147483648
          %v566 = vxor.u32 %v558, 2147483648
          %v567 = vmul.f32 %v559, 1.442695
          %v568 = vpow.pop %v567
          %v569 = vmul.f32 %v560, 1.442695
          %v570 = vpow.pop %v569
          %v571 = vmul.f32 %v561, 1.442695
          %v572 = vpow.pop %v571
          %v573 = vmul.f32 %v562, 1.442695
          %v574 = vpow.pop %v573
          %v575 = vmul.f32 %v563, 1.442695
          %v576 = vpow.pop %v575
          %v577 = vmul.f32 %v564, 1.442695
          %v578 = vpow.pop %v577
          %v579 = vmul.f32 %v565, 1.442695
          %v580 = vpow.pop %v579
          %v581 = vmul.f32 %v566, 1.442695
          %v582 = vpow.pop %v581
          %v583 = vadd.f32 %v568, 1.0
          %v584 = vadd.f32 %v570, 1.0
          %v585 = vadd.f32 %v572, 1.0
          %v586 = vadd.f32 %v574, 1.0
          %v587 = vadd.f32 %v576, 1.0
          %v588 = vadd.f32 %v578, 1.0
          %v589 = vadd.f32 %v580, 1.0
          %v590 = vadd.f32 %v582, 1.0
          %v591 = vrcp.pop %v583
          %v592 = vmul.f32 1.0, %v591
          %v593 = vrcp.pop %v584
          %v594 = vmul.f32 1.0, %v593
          %v595 = vrcp.pop %v585
          %v596 = vmul.f32 1.0, %v595
          %v597 = vrcp.pop %v586
          %v598 = vmul.f32 1.0, %v597
          %v599 = vrcp.pop %v587
          %v600 = vmul.f32 1.0, %v599
          %v601 = vrcp.pop %v588
          %v602 = vmul.f32 1.0, %v601
          %v603 = vrcp.pop %v589
          %v604 = vmul.f32 1.0, %v603
          %v605 = vrcp.pop %v590
          %v606 = vmul.f32 1.0, %v605
          %607 = vst.msk [vmem:[%s207] sm:$0xff] %vm285, %v592
          %608 = vst.msk [vmem:[%s207 + $0x8] sm:$0xff] %vm285, %v594
          %609 = vst.msk [vmem:[%s207 + $0x10] sm:$0xff] %vm285, %v596
          %610 = vst.msk [vmem:[%s207 + $0x18] sm:$0xff] %vm285, %v598
          %611 = vst.msk [vmem:[%s207 + $0x20] sm:$0xff] %vm285, %v600
          %612 = vst.msk [vmem:[%s207 + $0x28] sm:$0xff] %vm285, %v602
          %613 = vst.msk [vmem:[%s207 + $0x30] sm:$0xff] %vm285, %v604
          %614 = vst.msk [vmem:[%s207 + $0x38] sm:$0xff] %vm285, %v606
        $region44: #{tpu_custom_call.1} parent=31 // pred_fallthru
          _
        %p615 = scmp.lt.s32.totalorder %s21, 1
        %s616 = scalar_select %p615, %s21, 1
        %s617 = smul.addr %s616, 8
        %s618 = smul.addr %s617, 8
        %s619 = scalar_lea.vmem %s3, %s618
        // Predicated region
        $region45: #{tpu_custom_call.1} parent=31 // pred_check
          %p620 = pneg %p117
        $region46: #{tpu_custom_call.1} parent=31 // pred_check_branch
          %622 = sbr.rel (%p620) target = $region48
        $region47: #{tpu_custom_call.1} parent=31 // pred_region
          _
        $region48: #{tpu_custom_call.1} parent=31 // pred_fallthru
          _
      $region32: #{tpu_custom_call.1} parent=5 // pred_fallthru
        _
      %p623 = scmp.le.s32.totalorder 2, %s12
      // Predicated region
      $region49: #{tpu_custom_call.1} parent=5 // pred_check
        %p624 = pneg %p623
      $region50: #{tpu_custom_call.1} parent=5 // pred_check_branch
        %626 = sbr.rel (%p624) target = $region52
      $region51: #{tpu_custom_call.1} parent=5 // pred_region
        %s627 = ssub.s32 %s12, 2
        // Predicated region
        $region53: #{tpu_custom_call.1} parent=51 // pred_check
          %p628 = pneg %p123
        $region54: #{tpu_custom_call.1} parent=51 // pred_check_branch
          %630 = sbr.rel (%p628) target = $region56
        $region55: #{tpu_custom_call.1} parent=51 // pred_region
          %p631 = scmp.lt.s32.totalorder %s23, 1
          %s632 = scalar_select %p631, %s23, 1
          %s633 = smul.addr %s632, 8
          %s634 = smul.addr %s633, 8
          %s635 = scalar_lea.vmem %s3, %s634
        $region56: #{tpu_custom_call.1} parent=51 // pred_fallthru
          _
      $region52: #{tpu_custom_call.1} parent=5 // pred_fallthru
        _
    $region6: #{tpu_custom_call.1} parent=1 // loop_footer
      %s16 = sadd.s32 1, %s12
    $region7: #{tpu_custom_call.1} parent=1 // loop_footer_branch
      %11 = sbr.rel target = $region3
    $region8: #{tpu_custom_call.1} parent=1 // loop_exit
      _
    %636 = vsyncpa [#allocation5], 1
    %s637 = scalar_lea.sflag [#allocation5], 1
    %638 = vsyncpa %s637, 1

</llo_original>
